<compile_context>
chip_gen: v7x
topology: tpu7x:2x2x1
jax: 0.10.0
libtpu: 0.0.40
codegen_flags: <defaults>
</compile_context>

<pallas_src>
import functools

import jax
import jax.numpy as jnp
from jax.experimental import pallas as pl
from jax.experimental.pallas import tpu as pltpu


def _round_up(x, m):
    return ((x + m - 1) // m) * m


# ----------------------------------------------------------------------------
# Fused kernel:  features = ReLU(x @ W1 + b1) @ W2 + b2
#                per-tile partial = sum_valid_rows ||features - center||^2
# Grid: (batch_tiles,)  -- tiles are independent -> "parallel" (v7x megacore)
# ----------------------------------------------------------------------------
def _fused_kernel(x_ref, w1_ref, b1_ref, w2_ref, b2_ref, c_ref, *out_refs,
                  batch, tb, store_features):
    if store_features:
        feat_ref, part_ref = out_refs
    else:
        (part_ref,) = out_refs

    i = pl.program_id(0)

    # bf16 MXU operands, f32 accumulation; x is cast in-kernel (cheaper than an
    # HBM pre-pass over x in the wrapper).
    x = x_ref[...].astype(jnp.bfloat16)                       # [TB, F]
    h = jnp.dot(x, w1_ref[...],
                preferred_element_type=jnp.float32)           # [TB, H] f32 (MXU)
    h = jnp.maximum(h + b1_ref[...], 0.0)                     # f32 VPU (v5e-safe)
    z = jnp.dot(h.astype(jnp.bfloat16), w2_ref[...],
                preferred_element_type=jnp.float32)           # [TB, L] f32 (MXU)

    feat = z + b2_ref[...]                                    # features
    if store_features:
        feat_ref[...] = feat.astype(feat_ref.dtype)

    d = feat - c_ref[...]                                     # features - center
    row = i * tb + jax.lax.broadcasted_iota(jnp.int32, (tb, 1), 0)
    per_row = jnp.sum(d * d, axis=1, keepdims=True)           # [TB, 1]
    per_row = jnp.where(row < batch, per_row, 0.0)            # mask padded rows
    # Per-tile partial sum (lane-dense block write); final mean is done in the
    # wrapper so the batch axis stays fully parallel across TensorCores.
    part_ref[...] = jnp.zeros(part_ref.shape, jnp.float32) + jnp.sum(per_row)


def _vmem_bytes(tb, f, h, l, x_itemsize):
    # Conservative: weights counted with 2 buffers even though their block
    # index is constant; x / feature tiles double-buffered by the pipeline.
    weights = 2 * ((f * h + h * l) * 2 + (h + 2 * l) * 4)
    return weights + 2 * tb * f * x_itemsize + 2 * tb * l * 4 + 2 * 8 * 128 * 4


def _pick_tile(b, f, h, l, x_itemsize, budget=40 * 1024 * 1024):
    tb = min(512, _round_up(max(b, 1), 16))
    while tb > 16 and _vmem_bytes(tb, f, h, l, x_itemsize) > budget:
        tb //= 2
    return tb


def fused_forward_and_loss(x_flat, w1_bf16, b1, w2_bf16, b2, center,
                           *, store_features=True):
    """Returns (features [B, L] f32 or None, loss scalar f32)."""
    B, F = x_flat.shape
    H = w1_bf16.shape[1]
    L = w2_bf16.shape[1]

    TB = _pick_tile(B, F, H, L, x_flat.dtype.itemsize)
    Bp = _round_up(B, TB)
    if Bp != B:   # only copy x when the batch actually needs padding
        x_flat = jnp.zeros((Bp, F), x_flat.dtype).at[:B].set(x_flat)
    nt = Bp // TB

    kernel = functools.partial(_fused_kernel, batch=B, tb=TB,
                               store_features=store_features)

    part_shape = jax.ShapeDtypeStruct((nt, 8, 128), jnp.float32)
    part_spec = pl.BlockSpec((1, 8, 128), lambda i: (i, 0, 0))
    if store_features:
        out_shape = (jax.ShapeDtypeStruct((Bp, L), jnp.float32), part_shape)
        out_specs = (pl.BlockSpec((TB, L), lambda i: (i, 0)), part_spec)
    else:
        out_shape = (part_shape,)
        out_specs = (part_spec,)

    vmem_limit = int(min(64 * 1024 * 1024,
                         max(32 * 1024 * 1024,
                             2 * _vmem_bytes(TB, F, H, L,
                                             x_flat.dtype.itemsize))))

    outs = pl.pallas_call(
        kernel,
        out_shape=out_shape,
        grid=(nt,),
        in_specs=[
            pl.BlockSpec((TB, F), lambda i: (i, 0)),   # x tile (pipelined)
            pl.BlockSpec((F, H), lambda i: (0, 0)),    # W1 resident (bf16)
            pl.BlockSpec((1, H), lambda i: (0, 0)),    # b1 (f32)
            pl.BlockSpec((H, L), lambda i: (0, 0)),    # W2 resident (bf16)
            pl.BlockSpec((1, L), lambda i: (0, 0)),    # b2 (f32)
            pl.BlockSpec((1, L), lambda i: (0, 0)),    # center (f32)
        ],
        out_specs=out_specs,
        compiler_params=pltpu.CompilerParams(
            dimension_semantics=("parallel",),
            vmem_limit_bytes=vmem_limit,
        ),
    )(x_flat, w1_bf16, b1, w2_bf16, b2, center)

    if store_features:
        feats_p, partials = outs
        feats = feats_p if Bp == B else feats_p[:B]
    else:
        (partials,) = outs
        feats = None

    loss = jnp.sum(partials[:, 0, 0]) * (1.0 / B)   # tiny final reduction
    return feats, loss


# ----------------------------------------------------------------------------
# Standalone loss kernel (module API: loss(features)), batch-tiled + pipelined.
# ----------------------------------------------------------------------------
def _loss_kernel(f_ref, c_ref, part_ref, *, batch, tb):
    i = pl.program_id(0)
    d = f_ref[...].astype(jnp.float32) - c_ref[...]
    row = i * tb + jax.lax.broadcasted_iota(jnp.int32, (tb, 1), 0)
    per_row = jnp.sum(d * d, axis=1, keepdims=True)
    per_row = jnp.where(row < batch, per_row, 0.0)
    part_ref[...] = jnp.zeros(part_ref.shape, jnp.float32) + jnp.sum(per_row)


def svdd_loss(features, center):
    B, L = features.shape
    sub = 16 if features.dtype == jnp.bfloat16 else 8
    TB = min(1024, _round_up(max(B, 1), sub))
    while TB > sub and 2 * TB * L * features.dtype.itemsize > 8 * 1024 * 1024:
        TB //= 2
    Bp = _round_up(B, TB)
    if Bp != B:
        features = jnp.zeros((Bp, L), features.dtype).at[:B].set(features)
    nt = Bp // TB

    partials = pl.pallas_call(
        functools.partial(_loss_kernel, batch=B, tb=TB),
        out_shape=jax.ShapeDtypeStruct((nt, 8, 128), jnp.float32),
        grid=(nt,),
        in_specs=[
            pl.BlockSpec((TB, L), lambda i: (i, 0)),
            pl.BlockSpec((1, L), lambda i: (0, 0)),
        ],
        out_specs=pl.BlockSpec((1, 8, 128), lambda i: (i, 0, 0)),
        compiler_params=pltpu.CompilerParams(
            dimension_semantics=("parallel",),
        ),
    )(features, center.reshape(1, L).astype(jnp.float32))
    return jnp.sum(partials[:, 0, 0]) * (1.0 / B)


# ----------------------------------------------------------------------------
# DeepSVDD wrapper (mirrors the nn.Module semantics)
# ----------------------------------------------------------------------------
class DeepSVDD:
    def __init__(self, params, latent_dim):
        w1, b1, w2, b2 = params
        _, H = w1.shape
        L = w2.shape[1]
        # One-time weight prep (hoisted out of the per-call path): bf16 MXU
        # operands, f32 biases.  Rebuilding these every forward was the main
        # extra HBM stream in the previous version.
        self._w1 = jnp.asarray(w1, jnp.bfloat16)
        self._b1 = jnp.asarray(b1, jnp.float32).reshape(1, H)
        self._w2 = jnp.asarray(w2, jnp.bfloat16)
        self._b2 = jnp.asarray(b2, jnp.float32).reshape(1, L)
        self.center = jnp.zeros((latent_dim,), dtype=jnp.float32)

    def _flatten(self, x):
        return x.reshape(x.shape[0], -1)      # no dtype cast: kernel casts in VMEM

    def forward(self, x):
        feats, _ = self.forward_with_loss(x)
        return feats

    def forward_with_loss(self, x):
        return fused_forward_and_loss(
            self._flatten(x), self._w1, self._b1, self._w2, self._b2,
            self.center.reshape(1, -1), store_features=True)

    def train_loss(self, x):
        # Loss-only path: skips the feature write stream entirely.
        _, loss = fused_forward_and_loss(
            self._flatten(x), self._w1, self._b1, self._w2, self._b2,
            self.center.reshape(1, -1), store_features=False)
        return loss

    def loss(self, features):
        return svdd_loss(features, self.center)


if __name__ == "__main__":
    # Small shapes consistent with a conv-style input.
    B, C, Hs, Ws = 2, 4, 16, 16
    in_features = C * Hs * Ws          # 1024
    hidden = 32
    latent_dim = 32

    key = jax.random.PRNGKey(0)
    kx, k1, k2, k3, k4 = jax.random.split(key, 5)

    x = jax.random.normal(kx, (B, C, Hs, Ws), dtype=jnp.float32)

    w1 = jax.random.normal(k1, (in_features, hidden), dtype=jnp.float32) * 0.02
    b1 = jax.random.normal(k2, (1, hidden), dtype=jnp.float32) * 0.01
    w2 = jax.random.normal(k3, (hidden, latent_dim), dtype=jnp.float32) * 0.1
    b2 = jax.random.normal(k4, (1, latent_dim), dtype=jnp.float32) * 0.01

    model = DeepSVDD((w1, b1, w2, b2), latent_dim)

    # Fused forward + loss (one Pallas kernel).
    features, fused_loss = model.forward_with_loss(x)
    features = jax.block_until_ready(features)
    fused_loss = jax.block_until_ready(fused_loss)

    # Loss-only variant (no feature write).
    train_loss = jax.block_until_ready(model.train_loss(x))

    # Standalone loss kernel (module-style loss(features)).
    loss_val = jax.block_until_ready(model.loss(features))

    # Reference in plain JAX, mimicking bf16 MXU operands / f32 accumulation.
    x_flat = x.reshape(B, -1)
    ref_h = jnp.dot(x_flat.astype(jnp.bfloat16), w1.astype(jnp.bfloat16),
                    preferred_element_type=jnp.float32) + b1
    ref_h = jnp.maximum(ref_h, 0.0)
    ref_feat = jnp.dot(ref_h.astype(jnp.bfloat16), w2.astype(jnp.bfloat16),
                       preferred_element_type=jnp.float32) + b2
    ref_loss = jnp.mean(jnp.sum((ref_feat - model.center) ** 2, axis=1))

    assert features.shape == (B, latent_dim)
    assert jnp.allclose(features, ref_feat, atol=1e-3, rtol=1e-3), "features mismatch"
    assert jnp.allclose(fused_loss, ref_loss, atol=1e-2, rtol=1e-3), "fused loss mismatch"
    assert jnp.allclose(train_loss, fused_loss, atol=1e-3, rtol=1e-3), "loss-only mismatch"
    assert jnp.allclose(loss_val, ref_loss, atol=1e-2, rtol=1e-3), "loss mismatch"

    print("KERNEL_OK")
</pallas_src>

<mosaic_0001>
module attributes {stable_mosaic.version = 11 : i64} {
  func.func @_fused_kernel(%arg0: i32, %arg1: memref<16x1024xf32, #tpu.memory_space<vmem>>, %arg2: memref<1024x32xbf16, #tpu.memory_space<vmem>>, %arg3: memref<1x32xf32, #tpu.memory_space<vmem>>, %arg4: memref<32x32xbf16, #tpu.memory_space<vmem>>, %arg5: memref<1x32xf32, #tpu.memory_space<vmem>>, %arg6: memref<1x32xf32, #tpu.memory_space<vmem>>, %arg7: memref<16x32xf32, #tpu.memory_space<vmem>>, %arg8: memref<1x8x128xf32, #tpu.memory_space<vmem>>) attributes {dimension_semantics = [#tpu.dimension_semantics<parallel>], iteration_bounds = array<i64: 1>, scalar_prefetch = 0 : i64, scratch_operands = 0 : i64, tpu.core_type = #tpu.core_type<tc>, window_params = [{transform_indices = @transform_0, window_bounds = array<i64: 16, 1024>}, {pipeline_mode = #tpu.pipeline_mode<synchronous>, transform_indices = @transform_1, window_bounds = array<i64: 1024, 32>}, {pipeline_mode = #tpu.pipeline_mode<synchronous>, transform_indices = @transform_2, window_bounds = array<i64: 1, 32>}, {pipeline_mode = #tpu.pipeline_mode<synchronous>, transform_indices = @transform_3, window_bounds = array<i64: 32, 32>}, {pipeline_mode = #tpu.pipeline_mode<synchronous>, transform_indices = @transform_4, window_bounds = array<i64: 1, 32>}, {pipeline_mode = #tpu.pipeline_mode<synchronous>, transform_indices = @transform_5, window_bounds = array<i64: 1, 32>}, {transform_indices = @transform_6, window_bounds = array<i64: 16, 32>}, {transform_indices = @transform_7, window_bounds = array<i64: 1, 8, 128>}]} {
    %c0 = arith.constant 0 : index
    %c0_0 = arith.constant 0 : index
    %0 = vector.load %arg1[%c0, %c0_0] : memref<16x1024xf32, #tpu.memory_space<vmem>>, vector<16x1024xf32>
    %1 = arith.truncf %0 : vector<16x1024xf32> to vector<16x1024xbf16>
    %c0_1 = arith.constant 0 : index
    %c0_2 = arith.constant 0 : index
    %2 = vector.load %arg2[%c0_1, %c0_2] : memref<1024x32xbf16, #tpu.memory_space<vmem>>, vector<1024x32xbf16>
    %cst = arith.constant dense<0.000000e+00> : vector<16x32xf32>
    %3 = tpu.matmul %1, %2, %cst {dimension_numbers = #tpu.dot_dimension_numbers<[1], [0], [0], [1], [0, 0, 1, 1], [], []>} : vector<16x1024xbf16>, vector<1024x32xbf16>, vector<16x32xf32> -> vector<16x32xf32>
    %c0_3 = arith.constant 0 : index
    %c0_4 = arith.constant 0 : index
    %4 = vector.load %arg3[%c0_3, %c0_4] : memref<1x32xf32, #tpu.memory_space<vmem>>, vector<1x32xf32>
    %5 = vector.broadcast %4 : vector<1x32xf32> to vector<16x32xf32>
    %6 = arith.addf %3, %5 : vector<16x32xf32>
    %cst_5 = arith.constant 0.000000e+00 : f32
    %7 = vector.broadcast %cst_5 : f32 to vector<16x32xf32>
    %8 = arith.maximumf %6, %7 : vector<16x32xf32>
    %9 = arith.truncf %8 : vector<16x32xf32> to vector<16x32xbf16>
    %c0_6 = arith.constant 0 : index
    %c0_7 = arith.constant 0 : index
    %10 = vector.load %arg4[%c0_6, %c0_7] : memref<32x32xbf16, #tpu.memory_space<vmem>>, vector<32x32xbf16>
    %cst_8 = arith.constant dense<0.000000e+00> : vector<16x32xf32>
    %11 = tpu.matmul %9, %10, %cst_8 {dimension_numbers = #tpu.dot_dimension_numbers<[1], [0], [0], [1], [0, 0, 1, 1], [], []>} : vector<16x32xbf16>, vector<32x32xbf16>, vector<16x32xf32> -> vector<16x32xf32>
    %c0_9 = arith.constant 0 : index
    %c0_10 = arith.constant 0 : index
    %12 = vector.load %arg5[%c0_9, %c0_10] : memref<1x32xf32, #tpu.memory_space<vmem>>, vector<1x32xf32>
    %13 = vector.broadcast %12 : vector<1x32xf32> to vector<16x32xf32>
    %14 = arith.addf %11, %13 : vector<16x32xf32>
    %c0_11 = arith.constant 0 : index
    %c0_12 = arith.constant 0 : index
    %15 = vector.load %arg7[%c0_11, %c0_12] : memref<16x32xf32, #tpu.memory_space<vmem>>, vector<16x32xf32>
    tpu.vector_store %arg7[%c0_11, %c0_12], %14 {strides = array<i32>} : memref<16x32xf32, #tpu.memory_space<vmem>>, vector<16x32xf32>,
    %c0_13 = arith.constant 0 : index
    %c0_14 = arith.constant 0 : index
    %16 = vector.load %arg6[%c0_13, %c0_14] : memref<1x32xf32, #tpu.memory_space<vmem>>, vector<1x32xf32>
    %17 = vector.broadcast %16 : vector<1x32xf32> to vector<16x32xf32>
    %18 = arith.subf %14, %17 : vector<16x32xf32>
    %c16_i32 = arith.constant 16 : i32
    %19 = arith.muli %arg0, %c16_i32 : i32
    %20 = tpu.iota {dimensions = array<i32: 0>} : vector<16x1xi32>
    %21 = vector.broadcast %19 : i32 to vector<16x1xi32>
    %22 = arith.addi %21, %20 : vector<16x1xi32>
    %23 = arith.mulf %18, %18 : vector<16x32xf32>
    %cst_15 = arith.constant dense<0.000000e+00> : vector<16xf32>
    %24 = vector.multi_reduction <add>, %23, %cst_15 [1] : vector<16x32xf32> to vector<16xf32>
    %25 = vector.shape_cast %24 : vector<16xf32> to vector<16x1xf32>
    %c2_i32 = arith.constant 2 : i32
    %26 = vector.broadcast %c2_i32 : i32 to vector<16x1xi32>
    %27 = arith.cmpi slt, %22, %26 : vector<16x1xi32>
    %cst_16 = arith.constant 0.000000e+00 : f32
    %28 = vector.broadcast %cst_16 : f32 to vector<16x1xf32>
    %29 = arith.select %27, %25, %28 : vector<16x1xi1>, vector<16x1xf32>
    %cst_17 = arith.constant 0.000000e+00 : f32
    %30 = vector.broadcast %cst_17 : f32 to vector<1x8x128xf32>
    %31 = vector.shape_cast %29 : vector<16x1xf32> to vector<1x16x1xf32>
    %cst_18 = arith.constant dense<0.000000e+00> : vector<1xf32>
    %32 = vector.multi_reduction <add>, %31, %cst_18 [1, 2] : vector<1x16x1xf32> to vector<1xf32>
    %33 = vector.shape_cast %32 : vector<1xf32> to vector<1x1x1xf32>
    %34 = vector.extract %33[0, 0, 0] : f32 from vector<1x1x1xf32>
    %35 = vector.broadcast %34 : f32 to vector<1x8x128xf32>
    %36 = arith.addf %30, %35 : vector<1x8x128xf32>
    %c0_19 = arith.constant 0 : index
    %c0_20 = arith.constant 0 : index
    %c0_21 = arith.constant 0 : index
    %37 = vector.load %arg8[%c0_19, %c0_20, %c0_21] : memref<1x8x128xf32, #tpu.memory_space<vmem>>, vector<1x8x128xf32>
    tpu.vector_store %arg8[%c0_19, %c0_20, %c0_21], %36 {strides = array<i32>} : memref<1x8x128xf32, #tpu.memory_space<vmem>>, vector<1x8x128xf32>,
    return
  }
  func.func @transform_0(%arg0: i32) -> (i32, i32) {
    %c0_i32 = arith.constant 0 : i32
    %c0_i32_0 = arith.constant 0 : i32
    return %arg0, %c0_i32 : i32, i32
  }
  func.func @transform_1(%arg0: i32) -> (i32, i32) {
    %c0_i32 = arith.constant 0 : i32
    %c0_i32_0 = arith.constant 0 : i32
    %c0_i32_1 = arith.constant 0 : i32
    return %c0_i32, %c0_i32_0 : i32, i32
  }
  func.func @transform_2(%arg0: i32) -> (i32, i32) {
    %c0_i32 = arith.constant 0 : i32
    %c0_i32_0 = arith.constant 0 : i32
    %c0_i32_1 = arith.constant 0 : i32
    return %c0_i32, %c0_i32_0 : i32, i32
  }
  func.func @transform_3(%arg0: i32) -> (i32, i32) {
    %c0_i32 = arith.constant 0 : i32
    %c0_i32_0 = arith.constant 0 : i32
    %c0_i32_1 = arith.constant 0 : i32
    return %c0_i32, %c0_i32_0 : i32, i32
  }
  func.func @transform_4(%arg0: i32) -> (i32, i32) {
    %c0_i32 = arith.constant 0 : i32
    %c0_i32_0 = arith.constant 0 : i32
    %c0_i32_1 = arith.constant 0 : i32
    return %c0_i32, %c0_i32_0 : i32, i32
  }
  func.func @transform_5(%arg0: i32) -> (i32, i32) {
    %c0_i32 = arith.constant 0 : i32
    %c0_i32_0 = arith.constant 0 : i32
    %c0_i32_1 = arith.constant 0 : i32
    return %c0_i32, %c0_i32_0 : i32, i32
  }
  func.func @transform_6(%arg0: i32) -> (i32, i32) {
    %c0_i32 = arith.constant 0 : i32
    %c0_i32_0 = arith.constant 0 : i32
    return %arg0, %c0_i32 : i32, i32
  }
  func.func @transform_7(%arg0: i32) -> (i32, i32, i32) {
    %c0_i32 = arith.constant 0 : i32
    %c0_i32_0 = arith.constant 0 : i32
    %c0_i32_1 = arith.constant 0 : i32
    return %arg0, %c0_i32, %c0_i32_0 : i32, i32, i32
  }
}

</mosaic_0001>

<llo_original>
// kernel: tpu_custom_call.1
$region0: #{tpu_custom_call.1}
  #allocation0 [shape = 'u32[]', space=smem, size = 0x4, offset = 0x4, fixed_abs, tag = 'smem constant byte address 0x4 - core index']
  #allocation1 [shape = 'u32[144,128]{1,0:T(1,128)}', space=vmem, size = 0x12000, scoped, tag = 'internal scratch']
  %s0 = inlined_call_operand.vmem [shape: f32[16,1024], index: 0, kind: input, shape index: {}]
  %s1 = inlined_call_operand.vmem [shape: bf16[1024,32], index: 1, kind: input, shape index: {}]
  %s2 = inlined_call_operand.vmem [shape: f32[1,32], index: 2, kind: input, shape index: {}]
  %s3 = inlined_call_operand.vmem [shape: bf16[32,32], index: 3, kind: input, shape index: {}]
  %s4 = inlined_call_operand.vmem [shape: f32[1,32], index: 4, kind: input, shape index: {}]
  %s5 = inlined_call_operand.vmem [shape: f32[1,32], index: 5, kind: input, shape index: {}]
  %s6 = inlined_call_operand.hbm [shape: f32[16,32], index: 6, kind: output, shape index: {0}]
  %s7 = inlined_call_operand.hbm [shape: f32[1,8,128], index: 7, kind: output, shape index: {1}]
  %8 = xla_tuple %s6, %s7
  %s9 = sld [smem:[#allocation0]]
  $region42: #{tpu_custom_call.1} parent=0
    _
  %s11 = ssub.s32 1, %s9
  %s12 = scalar_select 0, %s11, %s9
  $region1: #{tpu_custom_call.1} parent=0
    #allocation2 [shape = 'u8[8192]{0}', space=vmem, size = 0x2000, scoped, tag = 'output window, operand 0, single buffered']
    #allocation3 [shape = 's32[1]{0}', space=sflag, size = 0x4, scoped, tag = 'scoped memory for tpu_custom_call.1']
    #allocation4 [shape = 'u8[4096]{0}', space=vmem, size = 0x1000, scoped, tag = 'output window, operand 1, single buffered']
    #allocation5 [shape = 's32[1]{0}', space=sflag, size = 0x4, scoped, tag = 'scoped memory for tpu_custom_call.1']
    %13 = vsyncpa [#allocation3], 0
    %14 = vsyncpa [#allocation5], 0
    // Predicated region
    $region2: #{tpu_custom_call.1} parent=1 // pred_check
      _
    $region3: #{tpu_custom_call.1} parent=1 // pred_check_branch
      %16 = sbr.rel (0) target = $region5
    $region4: #{tpu_custom_call.1} parent=1 // pred_region
      _
    $region5: #{tpu_custom_call.1} parent=1 // pred_fallthru
      _
    // Predicated region
    $region6: #{tpu_custom_call.1} parent=1 // pred_check
      _
    $region7: #{tpu_custom_call.1} parent=1 // pred_check_branch
      %18 = sbr.rel (0) target = $region9
    $region8: #{tpu_custom_call.1} parent=1 // pred_region
      _
    $region9: #{tpu_custom_call.1} parent=1 // pred_fallthru
      _
    // Predicated region
    $region10: #{tpu_custom_call.1} parent=1 // pred_check
      _
    $region11: #{tpu_custom_call.1} parent=1 // pred_check_branch
      %20 = sbr.rel (0) target = $region13
    $region12: #{tpu_custom_call.1} parent=1 // pred_region
      _
    $region13: #{tpu_custom_call.1} parent=1 // pred_fallthru
      _
    // Predicated region
    $region14: #{tpu_custom_call.1} parent=1 // pred_check
      _
    $region15: #{tpu_custom_call.1} parent=1 // pred_check_branch
      %22 = sbr.rel (0) target = $region17
    $region16: #{tpu_custom_call.1} parent=1 // pred_region
      _
    $region17: #{tpu_custom_call.1} parent=1 // pred_fallthru
      _
    // Predicated region
    $region18: #{tpu_custom_call.1} parent=1 // pred_check
      _
    $region19: #{tpu_custom_call.1} parent=1 // pred_check_branch
      %24 = sbr.rel (0) target = $region21
    $region20: #{tpu_custom_call.1} parent=1 // pred_region
      _
    $region21: #{tpu_custom_call.1} parent=1 // pred_fallthru
      _
    // Predicated region
    $region22: #{tpu_custom_call.1} parent=1 // pred_check
      _
    $region23: #{tpu_custom_call.1} parent=1 // pred_check_branch
      %26 = sbr.rel (0) target = $region25
    $region24: #{tpu_custom_call.1} parent=1 // pred_region
      _
    $region25: #{tpu_custom_call.1} parent=1 // pred_fallthru
      _
    %v28 = vld [vmem:[%s0] sm:$0xff]
    %v29 = vld [vmem:[%s0 + $0x8] sm:$0xff]
    %v30 = vld [vmem:[%s0 + $0x10] sm:$0xff]
    %v31 = vld [vmem:[%s0 + $0x18] sm:$0xff]
    %v32 = vld [vmem:[%s0 + $0x20] sm:$0xff]
    %v33 = vld [vmem:[%s0 + $0x28] sm:$0xff]
    %v34 = vld [vmem:[%s0 + $0x30] sm:$0xff]
    %v35 = vld [vmem:[%s0 + $0x38] sm:$0xff]
    %v36 = vld [vmem:[%s0 + $0x40] sm:$0xff]
    %v37 = vld [vmem:[%s0 + $0x48] sm:$0xff]
    %v38 = vld [vmem:[%s0 + $0x50] sm:$0xff]
    %v39 = vld [vmem:[%s0 + $0x58] sm:$0xff]
    %v40 = vld [vmem:[%s0 + $0x60] sm:$0xff]
    %v41 = vld [vmem:[%s0 + $0x68] sm:$0xff]
    %v42 = vld [vmem:[%s0 + $0x70] sm:$0xff]
    %v43 = vld [vmem:[%s0 + $0x78] sm:$0xff]
    %v44 = vpack.c.bf16 %v36, %v28
    %v45 = vpack.c.bf16 %v37, %v29
    %v46 = vpack.c.bf16 %v38, %v30
    %v47 = vpack.c.bf16 %v39, %v31
    %v48 = vpack.c.bf16 %v40, %v32
    %v49 = vpack.c.bf16 %v41, %v33
    %v50 = vpack.c.bf16 %v42, %v34
    %v51 = vpack.c.bf16 %v43, %v35
    %v52 = vld [vmem:[%s1] sm:$0xf]
    %v53 = vld [vmem:[%s1 + $0x4] sm:$0xf]
    %v54 = vld [vmem:[%s1 + $0x8] sm:$0xf]
    %v55 = vld [vmem:[%s1 + $0xc] sm:$0xf]
    %v56 = vld [vmem:[%s1 + $0x10] sm:$0xf]
    %v57 = vld [vmem:[%s1 + $0x14] sm:$0xf]
    %v58 = vld [vmem:[%s1 + $0x18] sm:$0xf]
    %v59 = vld [vmem:[%s1 + $0x1c] sm:$0xf]
    %v60 = vld [vmem:[%s1 + $0x20] sm:$0xf]
    %v61 = vld [vmem:[%s1 + $0x24] sm:$0xf]
    %v62 = vld [vmem:[%s1 + $0x28] sm:$0xf]
    %v63 = vld [vmem:[%s1 + $0x2c] sm:$0xf]
    %v64 = vld [vmem:[%s1 + $0x30] sm:$0xf]
    %v65 = vld [vmem:[%s1 + $0x34] sm:$0xf]
    %v66 = vld [vmem:[%s1 + $0x38] sm:$0xf]
    %v67 = vld [vmem:[%s1 + $0x3c] sm:$0xf]
    %v68 = vld [vmem:[%s1 + $0x40] sm:$0xf]
    %v69 = vld [vmem:[%s1 + $0x44] sm:$0xf]
    %v70 = vld [vmem:[%s1 + $0x48] sm:$0xf]
    %v71 = vld [vmem:[%s1 + $0x4c] sm:$0xf]
    %v72 = vld [vmem:[%s1 + $0x50] sm:$0xf]
    %v73 = vld [vmem:[%s1 + $0x54] sm:$0xf]
    %v74 = vld [vmem:[%s1 + $0x58] sm:$0xf]
    %v75 = vld [vmem:[%s1 + $0x5c] sm:$0xf]
    %v76 = vld [vmem:[%s1 + $0x60] sm:$0xf]
    %v77 = vld [vmem:[%s1 + $0x64] sm:$0xf]
    %v78 = vld [vmem:[%s1 + $0x68] sm:$0xf]
    %v79 = vld [vmem:[%s1 + $0x6c] sm:$0xf]
    %v80 = vld [vmem:[%s1 + $0x70] sm:$0xf]
    %v81 = vld [vmem:[%s1 + $0x74] sm:$0xf]
    %v82 = vld [vmem:[%s1 + $0x78] sm:$0xf]
    %v83 = vld [vmem:[%s1 + $0x7c] sm:$0xf]
    %v84 = vld [vmem:[%s1 + $0x80] sm:$0xf]
    %v85 = vld [vmem:[%s1 + $0x84] sm:$0xf]
    %v86 = vld [vmem:[%s1 + $0x88] sm:$0xf]
    %v87 = vld [vmem:[%s1 + $0x8c] sm:$0xf]
    %v88 = vld [vmem:[%s1 + $0x90] sm:$0xf]
    %v89 = vld [vmem:[%s1 + $0x94] sm:$0xf]
    %v90 = vld [vmem:[%s1 + $0x98] sm:$0xf]
    %v91 = vld [vmem:[%s1 + $0x9c] sm:$0xf]
    %v92 = vld [vmem:[%s1 + $0xa0] sm:$0xf]
    %v93 = vld [vmem:[%s1 + $0xa4] sm:$0xf]
    %v94 = vld [vmem:[%s1 + $0xa8] sm:$0xf]
    %v95 = vld [vmem:[%s1 + $0xac] sm:$0xf]
    %v96 = vld [vmem:[%s1 + $0xb0] sm:$0xf]
    %v97 = vld [vmem:[%s1 + $0xb4] sm:$0xf]
    %v98 = vld [vmem:[%s1 + $0xb8] sm:$0xf]
    %v99 = vld [vmem:[%s1 + $0xbc] sm:$0xf]
    %v100 = vld [vmem:[%s1 + $0xc0] sm:$0xf]
    %v101 = vld [vmem:[%s1 + $0xc4] sm:$0xf]
    %v102 = vld [vmem:[%s1 + $0xc8] sm:$0xf]
    %v103 = vld [vmem:[%s1 + $0xcc] sm:$0xf]
    %v104 = vld [vmem:[%s1 + $0xd0] sm:$0xf]
    %v105 = vld [vmem:[%s1 + $0xd4] sm:$0xf]
    %v106 = vld [vmem:[%s1 + $0xd8] sm:$0xf]
    %v107 = vld [vmem:[%s1 + $0xdc] sm:$0xf]
    %v108 = vld [vmem:[%s1 + $0xe0] sm:$0xf]
    %v109 = vld [vmem:[%s1 + $0xe4] sm:$0xf]
    %v110 = vld [vmem:[%s1 + $0xe8] sm:$0xf]
    %v111 = vld [vmem:[%s1 + $0xec] sm:$0xf]
    %v112 = vld [vmem:[%s1 + $0xf0] sm:$0xf]
    %v113 = vld [vmem:[%s1 + $0xf4] sm:$0xf]
    %v114 = vld [vmem:[%s1 + $0xf8] sm:$0xf]
    %v115 = vld [vmem:[%s1 + $0xfc] sm:$0xf]
    %v116 = vld [vmem:[%s1 + $0x100] sm:$0xf]
    %v117 = vld [vmem:[%s1 + $0x104] sm:$0xf]
    %v118 = vld [vmem:[%s1 + $0x108] sm:$0xf]
    %v119 = vld [vmem:[%s1 + $0x10c] sm:$0xf]
    %v120 = vld [vmem:[%s1 + $0x110] sm:$0xf]
    %v121 = vld [vmem:[%s1 + $0x114] sm:$0xf]
    %v122 = vld [vmem:[%s1 + $0x118] sm:$0xf]
    %v123 = vld [vmem:[%s1 + $0x11c] sm:$0xf]
    %v124 = vld [vmem:[%s1 + $0x120] sm:$0xf]
    %v125 = vld [vmem:[%s1 + $0x124] sm:$0xf]
    %v126 = vld [vmem:[%s1 + $0x128] sm:$0xf]
    %v127 = vld [vmem:[%s1 + $0x12c] sm:$0xf]
    %v128 = vld [vmem:[%s1 + $0x130] sm:$0xf]
    %v129 = vld [vmem:[%s1 + $0x134] sm:$0xf]
    %v130 = vld [vmem:[%s1 + $0x138] sm:$0xf]
    %v131 = vld [vmem:[%s1 + $0x13c] sm:$0xf]
    %v132 = vld [vmem:[%s1 + $0x140] sm:$0xf]
    %v133 = vld [vmem:[%s1 + $0x144] sm:$0xf]
    %v134 = vld [vmem:[%s1 + $0x148] sm:$0xf]
    %v135 = vld [vmem:[%s1 + $0x14c] sm:$0xf]
    %v136 = vld [vmem:[%s1 + $0x150] sm:$0xf]
    %v137 = vld [vmem:[%s1 + $0x154] sm:$0xf]
    %v138 = vld [vmem:[%s1 + $0x158] sm:$0xf]
    %v139 = vld [vmem:[%s1 + $0x15c] sm:$0xf]
    %v140 = vld [vmem:[%s1 + $0x160] sm:$0xf]
    %v141 = vld [vmem:[%s1 + $0x164] sm:$0xf]
    %v142 = vld [vmem:[%s1 + $0x168] sm:$0xf]
    %v143 = vld [vmem:[%s1 + $0x16c] sm:$0xf]
    %v144 = vld [vmem:[%s1 + $0x170] sm:$0xf]
    %v145 = vld [vmem:[%s1 + $0x174] sm:$0xf]
    %v146 = vld [vmem:[%s1 + $0x178] sm:$0xf]
    %v147 = vld [vmem:[%s1 + $0x17c] sm:$0xf]
    %v148 = vld [vmem:[%s1 + $0x180] sm:$0xf]
    %v149 = vld [vmem:[%s1 + $0x184] sm:$0xf]
    %v150 = vld [vmem:[%s1 + $0x188] sm:$0xf]
    %v151 = vld [vmem:[%s1 + $0x18c] sm:$0xf]
    %v152 = vld [vmem:[%s1 + $0x190] sm:$0xf]
    %v153 = vld [vmem:[%s1 + $0x194] sm:$0xf]
    %v154 = vld [vmem:[%s1 + $0x198] sm:$0xf]
    %v155 = vld [vmem:[%s1 + $0x19c] sm:$0xf]
    %v156 = vld [vmem:[%s1 + $0x1a0] sm:$0xf]
    %v157 = vld [vmem:[%s1 + $0x1a4] sm:$0xf]
    %v158 = vld [vmem:[%s1 + $0x1a8] sm:$0xf]
    %v159 = vld [vmem:[%s1 + $0x1ac] sm:$0xf]
    %v160 = vld [vmem:[%s1 + $0x1b0] sm:$0xf]
    %v161 = vld [vmem:[%s1 + $0x1b4] sm:$0xf]
    %v162 = vld [vmem:[%s1 + $0x1b8] sm:$0xf]
    %v163 = vld [vmem:[%s1 + $0x1bc] sm:$0xf]
    %v164 = vld [vmem:[%s1 + $0x1c0] sm:$0xf]
    %v165 = vld [vmem:[%s1 + $0x1c4] sm:$0xf]
    %v166 = vld [vmem:[%s1 + $0x1c8] sm:$0xf]
    %v167 = vld [vmem:[%s1 + $0x1cc] sm:$0xf]
    %v168 = vld [vmem:[%s1 + $0x1d0] sm:$0xf]
    %v169 = vld [vmem:[%s1 + $0x1d4] sm:$0xf]
    %v170 = vld [vmem:[%s1 + $0x1d8] sm:$0xf]
    %v171 = vld [vmem:[%s1 + $0x1dc] sm:$0xf]
    %v172 = vld [vmem:[%s1 + $0x1e0] sm:$0xf]
    %v173 = vld [vmem:[%s1 + $0x1e4] sm:$0xf]
    %v174 = vld [vmem:[%s1 + $0x1e8] sm:$0xf]
    %v175 = vld [vmem:[%s1 + $0x1ec] sm:$0xf]
    %v176 = vld [vmem:[%s1 + $0x1f0] sm:$0xf]
    %v177 = vld [vmem:[%s1 + $0x1f4] sm:$0xf]
    %v178 = vld [vmem:[%s1 + $0x1f8] sm:$0xf]
    %v179 = vld [vmem:[%s1 + $0x1fc] sm:$0xf]
    %v180 = vld [vmem:[%s2] sm:$0x1]
    %v182 = vlaneseq
    %v183 = vshrl.u32 %v182, 7
    %v184 = vsub.s32 0, %v183
    %v185 = vrot.slane %v180, %v184
    %v315 = vunpack.c.l.b16 %v52
    %v316 = vunpack.c.l.b16 %v53
    %v317 = vunpack.c.l.b16 %v54
    %v318 = vunpack.c.l.b16 %v55
    %v319 = vunpack.c.l.b16 %v56
    %v320 = vunpack.c.l.b16 %v57
    %v321 = vunpack.c.l.b16 %v58
    %v322 = vunpack.c.l.b16 %v59
    %v323 = vunpack.c.l.b16 %v60
    %v324 = vunpack.c.l.b16 %v61
    %v325 = vunpack.c.l.b16 %v62
    %v326 = vunpack.c.l.b16 %v63
    %v327 = vunpack.c.l.b16 %v64
    %v328 = vunpack.c.l.b16 %v65
    %v329 = vunpack.c.l.b16 %v66
    %v330 = vunpack.c.l.b16 %v67
    %v331 = vunpack.c.l.b16 %v68
    %v332 = vunpack.c.l.b16 %v69
    %v333 = vunpack.c.l.b16 %v70
    %v334 = vunpack.c.l.b16 %v71
    %v335 = vunpack.c.l.b16 %v72
    %v336 = vunpack.c.l.b16 %v73
    %v337 = vunpack.c.l.b16 %v74
    %v338 = vunpack.c.l.b16 %v75
    %v339 = vunpack.c.l.b16 %v76
    %v340 = vunpack.c.l.b16 %v77
    %v341 = vunpack.c.l.b16 %v78
    %v342 = vunpack.c.l.b16 %v79
    %v343 = vunpack.c.l.b16 %v80
    %v344 = vunpack.c.l.b16 %v81
    %v345 = vunpack.c.l.b16 %v82
    %v346 = vunpack.c.l.b16 %v83
    %v347 = vunpack.c.l.b16 %v84
    %v348 = vunpack.c.l.b16 %v85
    %v349 = vunpack.c.l.b16 %v86
    %v350 = vunpack.c.l.b16 %v87
    %v351 = vunpack.c.l.b16 %v88
    %v352 = vunpack.c.l.b16 %v89
    %v353 = vunpack.c.l.b16 %v90
    %v354 = vunpack.c.l.b16 %v91
    %v355 = vunpack.c.l.b16 %v92
    %v356 = vunpack.c.l.b16 %v93
    %v357 = vunpack.c.l.b16 %v94
    %v358 = vunpack.c.l.b16 %v95
    %v359 = vunpack.c.l.b16 %v96
    %v360 = vunpack.c.l.b16 %v97
    %v361 = vunpack.c.l.b16 %v98
    %v362 = vunpack.c.l.b16 %v99
    %v363 = vunpack.c.l.b16 %v100
    %v364 = vunpack.c.l.b16 %v101
    %v365 = vunpack.c.l.b16 %v102
    %v366 = vunpack.c.l.b16 %v103
    %v367 = vunpack.c.l.b16 %v104
    %v368 = vunpack.c.l.b16 %v105
    %v369 = vunpack.c.l.b16 %v106
    %v370 = vunpack.c.l.b16 %v107
    %v371 = vunpack.c.l.b16 %v108
    %v372 = vunpack.c.l.b16 %v109
    %v373 = vunpack.c.l.b16 %v110
    %v374 = vunpack.c.l.b16 %v111
    %v375 = vunpack.c.l.b16 %v112
    %v376 = vunpack.c.l.b16 %v113
    %v377 = vunpack.c.l.b16 %v114
    %v378 = vunpack.c.l.b16 %v115
    %v379 = vunpack.c.l.b16 %v116
    %v380 = vunpack.c.l.b16 %v117
    %v381 = vunpack.c.l.b16 %v118
    %v382 = vunpack.c.l.b16 %v119
    %v383 = vunpack.c.l.b16 %v120
    %v384 = vunpack.c.l.b16 %v121
    %v385 = vunpack.c.l.b16 %v122
    %v386 = vunpack.c.l.b16 %v123
    %v387 = vunpack.c.l.b16 %v124
    %v388 = vunpack.c.l.b16 %v125
    %v389 = vunpack.c.l.b16 %v126
    %v390 = vunpack.c.l.b16 %v127
    %v391 = vunpack.c.l.b16 %v128
    %v392 = vunpack.c.l.b16 %v129
    %v393 = vunpack.c.l.b16 %v130
    %v394 = vunpack.c.l.b16 %v131
    %v395 = vunpack.c.l.b16 %v132
    %v396 = vunpack.c.l.b16 %v133
    %v397 = vunpack.c.l.b16 %v134
    %v398 = vunpack.c.l.b16 %v135
    %v399 = vunpack.c.l.b16 %v136
    %v400 = vunpack.c.l.b16 %v137
    %v401 = vunpack.c.l.b16 %v138
    %v402 = vunpack.c.l.b16 %v139
    %v403 = vunpack.c.l.b16 %v140
    %v404 = vunpack.c.l.b16 %v141
    %v405 = vunpack.c.l.b16 %v142
    %v406 = vunpack.c.l.b16 %v143
    %v407 = vunpack.c.l.b16 %v144
    %v408 = vunpack.c.l.b16 %v145
    %v409 = vunpack.c.l.b16 %v146
    %v410 = vunpack.c.l.b16 %v147
    %v411 = vunpack.c.l.b16 %v148
    %v412 = vunpack.c.l.b16 %v149
    %v413 = vunpack.c.l.b16 %v150
    %v414 = vunpack.c.l.b16 %v151
    %v415 = vunpack.c.l.b16 %v152
    %v416 = vunpack.c.l.b16 %v153
    %v417 = vunpack.c.l.b16 %v154
    %v418 = vunpack.c.l.b16 %v155
    %v419 = vunpack.c.l.b16 %v156
    %v420 = vunpack.c.l.b16 %v157
    %v421 = vunpack.c.l.b16 %v158
    %v422 = vunpack.c.l.b16 %v159
    %v423 = vunpack.c.l.b16 %v160
    %v424 = vunpack.c.l.b16 %v161
    %v425 = vunpack.c.l.b16 %v162
    %v426 = vunpack.c.l.b16 %v163
    %v427 = vunpack.c.l.b16 %v164
    %v428 = vunpack.c.l.b16 %v165
    %v429 = vunpack.c.l.b16 %v166
    %v430 = vunpack.c.l.b16 %v167
    %v431 = vunpack.c.l.b16 %v168
    %v432 = vunpack.c.l.b16 %v169
    %v433 = vunpack.c.l.b16 %v170
    %v434 = vunpack.c.l.b16 %v171
    %v435 = vunpack.c.l.b16 %v172
    %v436 = vunpack.c.l.b16 %v173
    %v437 = vunpack.c.l.b16 %v174
    %v438 = vunpack.c.l.b16 %v175
    %v439 = vunpack.c.l.b16 %v176
    %v440 = vunpack.c.l.b16 %v177
    %v441 = vunpack.c.l.b16 %v178
    %v442 = vunpack.c.l.b16 %v179
    %v443 = vpack.c.b16 %v316, %v315
    %v444 = vpack.c.b16 %v318, %v317
    %v445 = vpack.c.b16 %v320, %v319
    %v446 = vpack.c.b16 %v322, %v321
    %v447 = vpack.c.b16 %v324, %v323
    %v448 = vpack.c.b16 %v326, %v325
    %v449 = vpack.c.b16 %v328, %v327
    %v450 = vpack.c.b16 %v330, %v329
    %v451 = vpack.c.b16 %v332, %v331
    %v452 = vpack.c.b16 %v334, %v333
    %v453 = vpack.c.b16 %v336, %v335
    %v454 = vpack.c.b16 %v338, %v337
    %v455 = vpack.c.b16 %v340, %v339
    %v456 = vpack.c.b16 %v342, %v341
    %v457 = vpack.c.b16 %v344, %v343
    %v458 = vpack.c.b16 %v346, %v345
    %v459 = vpack.c.b16 %v348, %v347
    %v460 = vpack.c.b16 %v350, %v349
    %v461 = vpack.c.b16 %v352, %v351
    %v462 = vpack.c.b16 %v354, %v353
    %v463 = vpack.c.b16 %v356, %v355
    %v464 = vpack.c.b16 %v358, %v357
    %v465 = vpack.c.b16 %v360, %v359
    %v466 = vpack.c.b16 %v362, %v361
    %v467 = vpack.c.b16 %v364, %v363
    %v468 = vpack.c.b16 %v366, %v365
    %v469 = vpack.c.b16 %v368, %v367
    %v470 = vpack.c.b16 %v370, %v369
    %v471 = vpack.c.b16 %v372, %v371
    %v472 = vpack.c.b16 %v374, %v373
    %v473 = vpack.c.b16 %v376, %v375
    %v474 = vpack.c.b16 %v378, %v377
    %v475 = vpack.c.b16 %v380, %v379
    %v476 = vpack.c.b16 %v382, %v381
    %v477 = vpack.c.b16 %v384, %v383
    %v478 = vpack.c.b16 %v386, %v385
    %v479 = vpack.c.b16 %v388, %v387
    %v480 = vpack.c.b16 %v390, %v389
    %v481 = vpack.c.b16 %v392, %v391
    %v482 = vpack.c.b16 %v394, %v393
    %v483 = vpack.c.b16 %v396, %v395
    %v484 = vpack.c.b16 %v398, %v397
    %v485 = vpack.c.b16 %v400, %v399
    %v486 = vpack.c.b16 %v402, %v401
    %v487 = vpack.c.b16 %v404, %v403
    %v488 = vpack.c.b16 %v406, %v405
    %v489 = vpack.c.b16 %v408, %v407
    %v490 = vpack.c.b16 %v410, %v409
    %v491 = vpack.c.b16 %v412, %v411
    %v492 = vpack.c.b16 %v414, %v413
    %v493 = vpack.c.b16 %v416, %v415
    %v494 = vpack.c.b16 %v418, %v417
    %v495 = vpack.c.b16 %v420, %v419
    %v496 = vpack.c.b16 %v422, %v421
    %v497 = vpack.c.b16 %v424, %v423
    %v498 = vpack.c.b16 %v426, %v425
    %v499 = vpack.c.b16 %v428, %v427
    %v500 = vpack.c.b16 %v430, %v429
    %v501 = vpack.c.b16 %v432, %v431
    %v502 = vpack.c.b16 %v434, %v433
    %v503 = vpack.c.b16 %v436, %v435
    %v504 = vpack.c.b16 %v438, %v437
    %v505 = vpack.c.b16 %v440, %v439
    %v506 = vpack.c.b16 %v442, %v441
    %571 = vmatprep.subr.bf16.mxu0 0
    %572 = vmatpush1.bf16.msra.mxu0 %v443
    %573 = vmatprep.subr.bf16.mxu0 0
    %574 = vmatpush1.bf16.msra.mxu0 %v444
    %575 = vmatprep.subr.bf16.mxu0 0
    %576 = vmatpush1.bf16.msra.mxu0 %v445
    %577 = vmatprep.subr.bf16.mxu0 0
    %578 = vmatpush1.bf16.msra.mxu0 %v446
    %579 = vmatprep.subr.bf16.mxu0 0
    %580 = vmatpush1.bf16.msra.mxu0 %v447
    %581 = vmatprep.subr.bf16.mxu0 0
    %582 = vmatpush1.bf16.msra.mxu0 %v448
    %583 = vmatprep.subr.bf16.mxu0 0
    %584 = vmatpush1.bf16.msra.mxu0 %v449
    %585 = vmatprep.subr.bf16.mxu0 0
    %586 = vmatpush1.bf16.msra.mxu0 %v450
    %587 = vmatprep.subr.bf16.mxu0 0
    %588 = vmatpush1.bf16.msra.mxu0 %v451
    %589 = vmatprep.subr.bf16.mxu0 0
    %590 = vmatpush1.bf16.msra.mxu0 %v452
    %591 = vmatprep.subr.bf16.mxu0 0
    %592 = vmatpush1.bf16.msra.mxu0 %v453
    %593 = vmatprep.subr.bf16.mxu0 0
    %594 = vmatpush1.bf16.msra.mxu0 %v454
    %595 = vmatprep.subr.bf16.mxu0 0
    %596 = vmatpush1.bf16.msra.mxu0 %v455
    %597 = vmatprep.subr.bf16.mxu0 0
    %598 = vmatpush1.bf16.msra.mxu0 %v456
    %599 = vmatprep.subr.bf16.mxu0 0
    %600 = vmatpush1.bf16.msra.mxu0 %v457
    %601 = vmatprep.subr.bf16.mxu0 0
    %602 = vmatpush1.bf16.msra.mxu0 %v458
    %603 = vmatprep.mubr.bf16.mxu0 %v45
    %604 = vmatmul.mubr.bf16.gmra.mrb[0].mxu0 %v44
    %v605 = vpop.f32.mrb[0].mxu0
    %v606 = vadd.f32 %v185, %v605
    %v607 = vpop.f32.mrb[0].mxu0
    %v608 = vpop.f32.mrb[0].mxu0
    %v609 = vadd.f32 %v185, %v608
    %v610 = vpop.f32.mrb[0].mxu0
    %611 = vdwg.mxu0
    %612 = vmatprep.subr.bf16.mxu0 0
    %613 = vmatpush1.bf16.msra.mxu0 %v459
    %614 = vmatprep.subr.bf16.mxu0 0
    %615 = vmatpush1.bf16.msra.mxu0 %v460
    %616 = vmatprep.subr.bf16.mxu0 0
    %617 = vmatpush1.bf16.msra.mxu0 %v461
    %618 = vmatprep.subr.bf16.mxu0 0
    %619 = vmatpush1.bf16.msra.mxu0 %v462
    %620 = vmatprep.subr.bf16.mxu0 0
    %621 = vmatpush1.bf16.msra.mxu0 %v463
    %622 = vmatprep.subr.bf16.mxu0 0
    %623 = vmatpush1.bf16.msra.mxu0 %v464
    %624 = vmatprep.subr.bf16.mxu0 0
    %625 = vmatpush1.bf16.msra.mxu0 %v465
    %626 = vmatprep.subr.bf16.mxu0 0
    %627 = vmatpush1.bf16.msra.mxu0 %v466
    %628 = vmatprep.subr.bf16.mxu0 0
    %629 = vmatpush1.bf16.msra.mxu0 %v467
    %630 = vmatprep.subr.bf16.mxu0 0
    %631 = vmatpush1.bf16.msra.mxu0 %v468
    %632 = vmatprep.subr.bf16.mxu0 0
    %633 = vmatpush1.bf16.msra.mxu0 %v469
    %634 = vmatprep.subr.bf16.mxu0 0
    %635 = vmatpush1.bf16.msra.mxu0 %v470
    %636 = vmatprep.subr.bf16.mxu0 0
    %637 = vmatpush1.bf16.msra.mxu0 %v471
    %638 = vmatprep.subr.bf16.mxu0 0
    %639 = vmatpush1.bf16.msra.mxu0 %v472
    %640 = vmatprep.subr.bf16.mxu0 0
    %641 = vmatpush1.bf16.msra.mxu0 %v473
    %642 = vmatprep.subr.bf16.mxu0 0
    %643 = vmatpush1.bf16.msra.mxu0 %v474
    %644 = vmatprep.mubr.bf16.mxu0 %v47
    %645 = vmatmul.mubr.bf16.gmra.mrb[0].mxu0 %v46
    %v646 = vpop.f32.mrb[0].mxu0
    %v647 = vadd.f32 %v606, %v646
    %v648 = vpop.f32.mrb[0].mxu0
    %v649 = vpop.f32.mrb[0].mxu0
    %v650 = vadd.f32 %v609, %v649
    %v651 = vpop.f32.mrb[0].mxu0
    %652 = vdwg.mxu0
    %653 = vmatprep.subr.bf16.mxu0 0
    %654 = vmatpush1.bf16.msra.mxu0 %v475
    %655 = vmatprep.subr.bf16.mxu0 0
    %656 = vmatpush1.bf16.msra.mxu0 %v476
    %657 = vmatprep.subr.bf16.mxu0 0
    %658 = vmatpush1.bf16.msra.mxu0 %v477
    %659 = vmatprep.subr.bf16.mxu0 0
    %660 = vmatpush1.bf16.msra.mxu0 %v478
    %661 = vmatprep.subr.bf16.mxu0 0
    %662 = vmatpush1.bf16.msra.mxu0 %v479
    %663 = vmatprep.subr.bf16.mxu0 0
    %664 = vmatpush1.bf16.msra.mxu0 %v480
    %665 = vmatprep.subr.bf16.mxu0 0
    %666 = vmatpush1.bf16.msra.mxu0 %v481
    %667 = vmatprep.subr.bf16.mxu0 0
    %668 = vmatpush1.bf16.msra.mxu0 %v482
    %669 = vmatprep.subr.bf16.mxu0 0
    %670 = vmatpush1.bf16.msra.mxu0 %v483
    %671 = vmatprep.subr.bf16.mxu0 0
    %672 = vmatpush1.bf16.msra.mxu0 %v484
    %673 = vmatprep.subr.bf16.mxu0 0
    %674 = vmatpush1.bf16.msra.mxu0 %v485
    %675 = vmatprep.subr.bf16.mxu0 0
    %676 = vmatpush1.bf16.msra.mxu0 %v486
    %677 = vmatprep.subr.bf16.mxu0 0
    %678 = vmatpush1.bf16.msra.mxu0 %v487
    %679 = vmatprep.subr.bf16.mxu0 0
    %680 = vmatpush1.bf16.msra.mxu0 %v488
    %681 = vmatprep.subr.bf16.mxu0 0
    %682 = vmatpush1.bf16.msra.mxu0 %v489
    %683 = vmatprep.subr.bf16.mxu0 0
    %684 = vmatpush1.bf16.msra.mxu0 %v490
    %685 = vmatprep.mubr.bf16.mxu0 %v49
    %686 = vmatmul.mubr.bf16.gmra.mrb[0].mxu0 %v48
    %v687 = vpop.f32.mrb[0].mxu0
    %v688 = vadd.f32 %v647, %v687
    %v689 = vpop.f32.mrb[0].mxu0
    %v690 = vpop.f32.mrb[0].mxu0
    %v691 = vadd.f32 %v650, %v690
    %v692 = vpop.f32.mrb[0].mxu0
    %693 = vdwg.mxu0
    %694 = vmatprep.subr.bf16.mxu0 0
    %695 = vmatpush1.bf16.msra.mxu0 %v491
    %696 = vmatprep.subr.bf16.mxu0 0
    %697 = vmatpush1.bf16.msra.mxu0 %v492
    %698 = vmatprep.subr.bf16.mxu0 0
    %699 = vmatpush1.bf16.msra.mxu0 %v493
    %700 = vmatprep.subr.bf16.mxu0 0
    %701 = vmatpush1.bf16.msra.mxu0 %v494
    %702 = vmatprep.subr.bf16.mxu0 0
    %703 = vmatpush1.bf16.msra.mxu0 %v495
    %704 = vmatprep.subr.bf16.mxu0 0
    %705 = vmatpush1.bf16.msra.mxu0 %v496
    %706 = vmatprep.subr.bf16.mxu0 0
    %707 = vmatpush1.bf16.msra.mxu0 %v497
    %708 = vmatprep.subr.bf16.mxu0 0
    %709 = vmatpush1.bf16.msra.mxu0 %v498
    %710 = vmatprep.subr.bf16.mxu0 0
    %711 = vmatpush1.bf16.msra.mxu0 %v499
    %712 = vmatprep.subr.bf16.mxu0 0
    %713 = vmatpush1.bf16.msra.mxu0 %v500
    %714 = vmatprep.subr.bf16.mxu0 0
    %715 = vmatpush1.bf16.msra.mxu0 %v501
    %716 = vmatprep.subr.bf16.mxu0 0
    %717 = vmatpush1.bf16.msra.mxu0 %v502
    %718 = vmatprep.subr.bf16.mxu0 0
    %719 = vmatpush1.bf16.msra.mxu0 %v503
    %720 = vmatprep.subr.bf16.mxu0 0
    %721 = vmatpush1.bf16.msra.mxu0 %v504
    %722 = vmatprep.subr.bf16.mxu0 0
    %723 = vmatpush1.bf16.msra.mxu0 %v505
    %724 = vmatprep.subr.bf16.mxu0 0
    %725 = vmatpush1.bf16.msra.mxu0 %v506
    %726 = vmatprep.mubr.bf16.mxu0 %v51
    %727 = vmatmul.mubr.bf16.gmra.mrb[0].mxu0 %v50
    %v728 = vpop.f32.mrb[0].mxu0
    %v729 = vadd.f32 %v688, %v728
    %v730 = vpop.f32.mrb[0].mxu0
    %v731 = vpop.f32.mrb[0].mxu0
    %v732 = vadd.f32 %v691, %v731
    %v733 = vpop.f32.mrb[0].mxu0
    %734 = vdwg.mxu0
    %v735 = vmax.f32 %v729, 0.0
    %v736 = vmax.f32 %v732, 0.0
    %v737 = vpack.c.bf16 %v736, %v735
    %v738 = vld [vmem:[%s3] sm:$0xf]
    %v739 = vld [vmem:[%s3 + $0x4] sm:$0xf]
    %v740 = vld [vmem:[%s3 + $0x8] sm:$0xf]
    %v741 = vld [vmem:[%s3 + $0xc] sm:$0xf]
    %v742 = vld [vmem:[%s4] sm:$0x1]
    %v744 = vlaneseq
    %v745 = vshrl.u32 %v744, 7
    %v746 = vsub.s32 0, %v745
    %v747 = vrot.slane %v742, %v746
    %v753 = vunpack.c.l.b16 %v738
    %v754 = vunpack.c.l.b16 %v739
    %v755 = vunpack.c.l.b16 %v740
    %v756 = vunpack.c.l.b16 %v741
    %v757 = vpack.c.b16 %v754, %v753
    %v758 = vpack.c.b16 %v756, %v755
    %vm761 = vcmask 261120
    %v763 = vsel %vm761, %v737, 0
    %765 = vmatprep.subr.bf16.mxu0 0
    %766 = vmatpush1.bf16.msra.mxu0 %v757
    %767 = vmatprep.subr.bf16.mxu0 0
    %768 = vmatpush1.bf16.msra.mxu0 %v758
    %769 = vmatprep.subr.bf16.mxu0 0
    %770 = vmatpush1.bf16.msra.mxu0 0
    %771 = vmatprep.subr.bf16.mxu0 0
    %772 = vmatpush1.bf16.msra.mxu0 0
    %773 = vmatprep.subr.bf16.mxu0 0
    %774 = vmatpush1.bf16.msra.mxu0 0
    %775 = vmatprep.subr.bf16.mxu0 0
    %776 = vmatpush1.bf16.msra.mxu0 0
    %777 = vmatprep.subr.bf16.mxu0 0
    %778 = vmatpush1.bf16.msra.mxu0 0
    %779 = vmatprep.subr.bf16.mxu0 0
    %780 = vmatpush1.bf16.msra.mxu0 0
    %781 = vmatprep.subr.bf16.mxu0 0
    %782 = vmatpush1.bf16.msra.mxu0 0
    %783 = vmatprep.subr.bf16.mxu0 0
    %784 = vmatpush1.bf16.msra.mxu0 0
    %785 = vmatprep.subr.bf16.mxu0 0
    %786 = vmatpush1.bf16.msra.mxu0 0
    %787 = vmatprep.subr.bf16.mxu0 0
    %788 = vmatpush1.bf16.msra.mxu0 0
    %789 = vmatprep.subr.bf16.mxu0 0
    %790 = vmatpush1.bf16.msra.mxu0 0
    %791 = vmatprep.subr.bf16.mxu0 0
    %792 = vmatpush1.bf16.msra.mxu0 0
    %793 = vmatprep.subr.bf16.mxu0 0
    %794 = vmatpush1.bf16.msra.mxu0 0
    %795 = vmatprep.subr.bf16.mxu0 0
    %796 = vmatpush1.bf16.msra.mxu0 0
    %797 = vmatprep.mubr.bf16.mxu0 0
    %798 = vmatmul.mubr.bf16.gmra.mrb[0].mxu0 %v763
    %v799 = vpop.f32.mrb[0].mxu0
    %v800 = vadd.f32 %v747, %v799
    %v801 = vpop.f32.mrb[0].mxu0
    %v802 = vpop.f32.mrb[0].mxu0
    %v803 = vadd.f32 %v747, %v802
    %v804 = vpop.f32.mrb[0].mxu0
    %805 = vdwg.mxu0
    %806 = vst.msk [vmem:[#allocation2] sm:$0xff] %vm761, %v800
    %807 = vst.msk [vmem:[#allocation2 + $0x8] sm:$0xff] %vm761, %v803
    %v808 = vld [vmem:[%s5] sm:$0x1]
    %v810 = vlaneseq
    %v811 = vshrl.u32 %v810, 7
    %v812 = vsub.s32 0, %v811
    %v813 = vrot.slane %v808, %v812
    %v815 = vsub.f32 %v800, %v813
    %v816 = vsub.f32 %v803, %v813
    %s817 = smul.u32 0, 16
    %v818 = vlaneseq
    %v819 = vshrl.u32 %v818, 7
    %v820 = vadd.s32 %v819, 8
    %v821 = vstv %s817
    %v822 = vadd.s32 %v821, %v819
    %v823 = vadd.s32 %v821, %v820
    %v824 = vmul.f32 %v815, %v815
    %v825 = vmul.f32 %v816, %v816
    %v826 = vsel %vm761, %v824, 0.0
    %827 = vadd.xlane.f32.xlu0 %v826
    %v828 = vpop.xlane.xlu0 %827
    %v829 = vsel %vm761, %v825, 0.0
    %830 = vadd.xlane.f32.xlu0 %v829
    %v831 = vpop.xlane.xlu0 %830
    %vm832 = vcmp.lt.s32.totalorder %v822, 2
    %vm833 = vcmp.lt.s32.totalorder %v823, 2
    %v834 = vsel %vm832, %v828, 0.0
    %v835 = vsel %vm833, %v831, 0.0
    %vm836 = vcmask 7168
    %v837 = vsel %vm836, %v834, 0.0
    %v838 = vsel %vm836, %v835, 0.0
    %v839 = vadd.f32 %v837, %v838
    %840 = vadd.xlane.f32.xlu0 %v839
    %v841 = vpop.xlane.xlu0 %840
    %v842 = vrot.slane %v841, 4
    %v843 = vadd.f32 %v841, %v842
    %v844 = vrot.slane %v843, 2
    %v845 = vadd.f32 %v843, %v844
    %v846 = vrot.slane %v845, 1
    %v847 = vadd.f32 %v845, %v846
    %s848 = vtos %v847
    %v849 = vstv %s848
    %v850 = vadd.f32 %v849, 0.0
    %851 = vst [vmem:[#allocation4] sm:$0xff] %v850
    // Predicated region
    $region26: #{tpu_custom_call.1} parent=1 // pred_check
      _
    $region27: #{tpu_custom_call.1} parent=1 // pred_check_branch
      %853 = sbr.rel (0) target = $region29
    $region28: #{tpu_custom_call.1} parent=1 // pred_region
      %s855 = ssub.s32 256, 256
      %856 = vsyncadd [#allocation3], %s855
      %s857 = sshll.u32 [#allocation2], 4
      %s858 = int_to_ptr.vmem [resolvable:$true] %s857
      %863 = dma.vmem_to_hbm [thread:$0]  %s858, 256, %s6, [#allocation3], 128, 128, 8
    $region29: #{tpu_custom_call.1} parent=1 // pred_fallthru
      _
    // Predicated region
    $region30: #{tpu_custom_call.1} parent=1 // pred_check
      _
    $region31: #{tpu_custom_call.1} parent=1 // pred_check_branch
      %865 = sbr.rel (0) target = $region33
    $region32: #{tpu_custom_call.1} parent=1 // pred_region
      %s867 = ssub.s32 128, 128
      %868 = vsyncadd [#allocation5], %s867
      %s870 = sshll.u32 [#allocation4], 4
      %s871 = int_to_ptr.vmem [resolvable:$true] %s870
      %873 = dma.vmem_to_hbm [thread:$0]  %s871, 128, %s7, [#allocation5]
    $region33: #{tpu_custom_call.1} parent=1 // pred_fallthru
      _
    // Predicated region
    $region34: #{tpu_custom_call.1} parent=1 // pred_check
      _
    $region35: #{tpu_custom_call.1} parent=1 // pred_check_branch
      %875 = sbr.rel (0) target = $region37
    $region36: #{tpu_custom_call.1} parent=1 // pred_region
      %876 = dma.done [#allocation3], 256
    $region37: #{tpu_custom_call.1} parent=1 // pred_fallthru
      _
    // Predicated region
    $region38: #{tpu_custom_call.1} parent=1 // pred_check
      _
    $region39: #{tpu_custom_call.1} parent=1 // pred_check_branch
      %878 = sbr.rel (0) target = $region41
    $region40: #{tpu_custom_call.1} parent=1 // pred_region
      %879 = dma.done [#allocation5], 128
    $region41: #{tpu_custom_call.1} parent=1 // pred_fallthru
      _
    %880 = vsyncpa [#allocation3], 1
    %881 = vsyncpa [#allocation5], 1

</llo_original>
